<compile_context>
chip_gen: v6e
topology: v6e:2x2x1
jax: 0.10.0
libtpu: 0.0.40
codegen_flags: <defaults>
</compile_context>

<pallas_src>
import math
from functools import partial

import jax
import jax.numpy as jnp
from jax.experimental import pallas as pl
from jax.experimental.pallas import tpu as pltpu


def _swiglu_kernel(x_ref, o_ref, *, compute_dtype):
    h = o_ref.shape[-1]
    # Static slices of the single (tile_rows, 2h) block; lane-aligned (and
    # therefore free) when h is a multiple of 128.
    u = x_ref[:, :h].astype(compute_dtype)
    v = x_ref[:, h:].astype(compute_dtype)
    o_ref[...] = (u * (v * jax.nn.sigmoid(v))).astype(o_ref.dtype)


def _round_up(x, m):
    return ((x + m - 1) // m) * m


def _chip_profile():
    """Per-generation tuning knobs: #TensorCores, VMEM working-set budget,
    scoped-VMEM cap, and whether bf16 compute is native on the VPU/EUP."""
    kind = ""
    try:
        dev = jax.devices()[0]
        if dev.platform == "tpu":
            kind = dev.device_kind.lower()
    except Exception:
        pass
    if "v7" in kind or "7x" in kind:
        # v7x: 64 MiB VMEM per TC, ~3.2 TB/s per TC, 2 TCs/chip, bf16 VPU/EUP.
        return dict(n_tc=2, budget=40 << 20, cap=56 << 20, bf16_ok=True)
    if "v6" in kind:
        # v6e: 128 MiB VMEM, bf16 VPU/EUP.
        return dict(n_tc=1, budget=64 << 20, cap=100 << 20, bf16_ok=True)
    if "v5" in kind or "v4" in kind:
        # v5e/v5p/v4: 128 MiB VMEM; keep f32 compute (no bf16 VPU/EUP on v5e).
        return dict(n_tc=1, budget=64 << 20, cap=100 << 20, bf16_ok=False)
    # Unknown / older parts: conservative, matches the previously-validated run.
    return dict(n_tc=1, budget=16 << 20, cap=64 << 20, bf16_ok=False)


def swiglu(x, *, tile_rows=None, vmem_budget_bytes=None):
    """SwiGLU: split last dim in half, return u * silu(v).

    Works for any leading shape and any even last dim; best performance when
    the half-width H is a multiple of 128 (lane-aligned in-kernel split and
    unmasked lane-dense output stores).
    """
    *lead, d = x.shape
    assert d % 2 == 0, "last dim must be even"
    h = d // 2
    rows = math.prod(lead) if lead else 1
    x2 = x.reshape(rows, d)

    prof = _chip_profile()
    itemsize = jnp.dtype(x.dtype).itemsize
    # Sublane packing: f32 -> 8, bf16 -> 16, int8/fp8 -> 32.
    sublane = max(8, 32 // itemsize)

    if vmem_budget_bytes is None:
        vmem_budget_bytes = prof["budget"]

    if tile_rows is None:
        # Double-buffered working set per step: input (tile, 2h) + output (tile, h).
        bytes_per_row = 2 * (2 * h + h) * itemsize  # = 6*h*itemsize
        tile_rows = max(sublane, vmem_budget_bytes // max(bytes_per_row, 1))
        tile_rows = min(tile_rows, _round_up(rows, sublane))  # don't exceed data
        # Multi-TensorCore chips (v7x): keep >= 2 grid steps so the "parallel"
        # axis can shard across both cores instead of idling one.
        if prof["n_tc"] > 1 and rows > sublane:
            tile_rows = min(tile_rows,
                            _round_up(pl.cdiv(rows, prof["n_tc"]), sublane))
    tile_rows = _round_up(int(tile_rows), sublane)

    # Scoped-VMEM limit sized to the actual working set with margin, clamped to
    # a per-generation cap (<= 56 MiB on v7x's 64 MiB/TC, <= 100 MiB on v5e/v6e).
    working_set = 2 * tile_rows * 3 * h * itemsize
    vmem_limit = min(max(int(working_set * 1.4), 16 * 1024 * 1024), prof["cap"])

    grid = (pl.cdiv(rows, tile_rows),)

    # bf16 inputs compute in bf16 on chips with bf16 VPU/EUP; otherwise f32.
    compute_dtype = (x.dtype if (prof["bf16_ok"] and x.dtype == jnp.bfloat16)
                     else jnp.float32)

    cost = pl.CostEstimate(
        flops=4 * rows * h,
        transcendentals=rows * h,
        bytes_accessed=3 * rows * h * itemsize,
    )

    out = pl.pallas_call(
        partial(_swiglu_kernel, compute_dtype=compute_dtype),
        out_shape=jax.ShapeDtypeStruct((rows, h), x.dtype),
        grid=grid,
        in_specs=[
            # One contiguous (tile_rows, 2h) block; the u/v split is in-kernel.
            pl.BlockSpec((tile_rows, 2 * h), lambda i: (i, 0)),
        ],
        out_specs=pl.BlockSpec((tile_rows, h), lambda i: (i, 0)),
        compiler_params=pltpu.CompilerParams(
            dimension_semantics=("parallel",),
            vmem_limit_bytes=vmem_limit,
        ),
        cost_estimate=cost,
    )(x2)

    return out.reshape(*lead, h)


def _ref_swiglu(x):
    h = x.shape[-1] // 2
    u = x[..., :h].astype(jnp.float32)
    v = x[..., h:].astype(jnp.float32)
    return (u * (v * jax.nn.sigmoid(v))).astype(x.dtype)


if __name__ == "__main__":
    key = jax.random.PRNGKey(0)

    # Test 1: f32, batch=2, seq=8, feature dim = 2*H with H=128.
    B, S, H = 2, 8, 128
    k1, k2, k3 = jax.random.split(key, 3)
    x = jax.random.normal(k1, (B, S, 2 * H), dtype=jnp.float32)
    out = jax.block_until_ready(swiglu(x))
    ref = _ref_swiglu(x)
    assert out.shape == (B, S, H)
    assert jnp.allclose(out, ref, atol=1e-5, rtol=1e-5)

    # Test 2: bf16 with a row count that is NOT a multiple of the tile
    # (exercises the cdiv / partial-tail path and the bf16 compute path).
    B2, S2 = 3, 5  # rows = 15
    xb = jax.random.normal(k2, (B2, S2, 2 * H), dtype=jnp.bfloat16)
    outb = jax.block_until_ready(swiglu(xb))
    refb = _ref_swiglu(xb)
    assert outb.shape == (B2, S2, H)
    assert jnp.allclose(outb.astype(jnp.float32), refb.astype(jnp.float32),
                        atol=3e-2, rtol=3e-2)

    # Test 3: forced small tile -> multi-step grid (4 steps over 32 rows).
    B3, S3 = 4, 8
    xc = jax.random.normal(k3, (B3, S3, 2 * H), dtype=jnp.float32)
    outc = jax.block_until_ready(swiglu(xc, tile_rows=8))
    refc = _ref_swiglu(xc)
    assert outc.shape == (B3, S3, H)
    assert jnp.allclose(outc, refc, atol=1e-5, rtol=1e-5)

    print("KERNEL_OK")
</pallas_src>

<mosaic_0001>
module attributes {stable_mosaic.version = 11 : i64} {
  func.func @_swiglu_kernel(%arg0: i32, %arg1: memref<16x256xf32, #tpu.memory_space<vmem>>, %arg2: memref<16x128xf32, #tpu.memory_space<vmem>>) attributes {dimension_semantics = [#tpu.dimension_semantics<parallel>], iteration_bounds = array<i64: 1>, scalar_prefetch = 0 : i64, scratch_operands = 0 : i64, tpu.core_type = #tpu.core_type<tc>, window_params = [{transform_indices = @transform_0, window_bounds = array<i64: 16, 256>}, {transform_indices = @transform_1, window_bounds = array<i64: 16, 128>}]} {
    %c0 = arith.constant 0 : index
    %c0_0 = arith.constant 0 : index
    %0 = vector.load %arg1[%c0, %c0_0] : memref<16x256xf32, #tpu.memory_space<vmem>>, vector<16x128xf32>
    %c0_1 = arith.constant 0 : index
    %c128 = arith.constant 128 : index
    %1 = vector.load %arg1[%c0_1, %c128] : memref<16x256xf32, #tpu.memory_space<vmem>>, vector<16x128xf32>
    %2 = arith.negf %1 : vector<16x128xf32>
    %3 = math.exp %2 : vector<16x128xf32>
    %cst = arith.constant 1.000000e+00 : f32
    %4 = vector.broadcast %cst : f32 to vector<16x128xf32>
    %5 = arith.addf %4, %3 : vector<16x128xf32>
    %6 = arith.divf %4, %5 : vector<16x128xf32>
    %7 = arith.mulf %1, %6 : vector<16x128xf32>
    %8 = arith.mulf %0, %7 : vector<16x128xf32>
    %c0_2 = arith.constant 0 : index
    %c0_3 = arith.constant 0 : index
    %9 = vector.load %arg2[%c0_2, %c0_3] : memref<16x128xf32, #tpu.memory_space<vmem>>, vector<16x128xf32>
    tpu.vector_store %arg2[%c0_2, %c0_3], %8 {strides = array<i32>} : memref<16x128xf32, #tpu.memory_space<vmem>>, vector<16x128xf32>,
    return
  }
  func.func @transform_0(%arg0: i32) -> (i32, i32) {
    %c0_i32 = arith.constant 0 : i32
    %c0_i32_0 = arith.constant 0 : i32
    return %arg0, %c0_i32 : i32, i32
  }
  func.func @transform_1(%arg0: i32) -> (i32, i32) {
    %c0_i32 = arith.constant 0 : i32
    %c0_i32_0 = arith.constant 0 : i32
    return %arg0, %c0_i32 : i32, i32
  }
}

</mosaic_0001>

<llo_original>
// kernel: tpu_custom_call.1
$region0: #{tpu_custom_call.1}
  #allocation0 [shape = 'u32[]', space=smem, size = 0x4, offset = 0x4, fixed_abs, tag = 'smem constant byte address 0x4 - core index']
  #allocation1 [shape = 'u32[144,128]{1,0:T(1,128)}', space=vmem, size = 0x12000, scoped, tag = 'internal scratch']
  %s0 = inlined_call_operand.hbm [shape: f32[16,256], index: 0, kind: input, shape index: {}]
  %s1 = inlined_call_operand.hbm [shape: f32[16,128], index: 1, kind: output, shape index: {}]
  %s2 = sld [smem:[#allocation0]]
  $region18: #{tpu_custom_call.1} parent=0
    _
  %s4 = ssub.s32 1, %s2
  %s5 = scalar_select 0, %s4, %s2
  $region1: #{tpu_custom_call.1} parent=0
    #allocation2 [shape = 'u8[16384]{0}', space=vmem, size = 0x4000, scoped, tag = 'input window, operand 0, single buffered']
    #allocation3 [shape = 's32[1]{0}', space=sflag, size = 0x4, scoped, tag = 'scoped memory for tpu_custom_call.1']
    #allocation4 [shape = 's32[1]{0}', space=sflag, size = 0x4, scoped, tag = 'scoped memory for tpu_custom_call.1']
    #allocation5 [shape = 'u8[8192]{0}', space=vmem, size = 0x2000, scoped, tag = 'output window, operand 0, single buffered']
    %6 = vsyncpa [#allocation3], 0
    %7 = vsyncpa [#allocation4], 0
    // Predicated region
    $region2: #{tpu_custom_call.1} parent=1 // pred_check
      _
    $region3: #{tpu_custom_call.1} parent=1 // pred_check_branch
      %9 = sbr.rel (0) target = $region5
    $region4: #{tpu_custom_call.1} parent=1 // pred_region
      %s11 = ssub.s32 512, 512
      %12 = vsyncadd [#allocation3], %s11
      %s13 = sshll.u32 [#allocation2], 4
      %s14 = int_to_ptr.vmem [resolvable:$true] %s13
      %19 = dma.hbm_to_vmem [thread:$0]  %s0, 512, %s14, [#allocation3], 256, 256, 16
    $region5: #{tpu_custom_call.1} parent=1 // pred_fallthru
      _
    // Predicated region
    $region6: #{tpu_custom_call.1} parent=1 // pred_check
      _
    $region7: #{tpu_custom_call.1} parent=1 // pred_check_branch
      %21 = sbr.rel (0) target = $region9
    $region8: #{tpu_custom_call.1} parent=1 // pred_region
      %22 = dma.done [#allocation3], 512
    $region9: #{tpu_custom_call.1} parent=1 // pred_fallthru
      _
    %v23 = vld [vmem:[#allocation2] sm:$0xff]
    %v24 = vld [vmem:[#allocation2 + $0x10] sm:$0xff]
    %v25 = vld [vmem:[#allocation2 + $0x8] sm:$0xff]
    %v26 = vld [vmem:[#allocation2 + $0x18] sm:$0xff]
    %v27 = vxor.u32 %v25, 2147483648
    %v28 = vxor.u32 %v26, 2147483648
    %v29 = vmul.f32 %v27, 1.442695
    %v30 = vpow.pop %v29
    %v31 = vmul.f32 %v28, 1.442695
    %v32 = vpow.pop %v31
    %v33 = vadd.f32 %v30, 1.0
    %v34 = vadd.f32 %v32, 1.0
    %v35 = vrcp.pop %v33
    %v36 = vmul.f32 1.0, %v35
    %v37 = vrcp.pop %v34
    %v38 = vmul.f32 1.0, %v37
    %v39 = vmul.f32 %v25, %v36
    %v40 = vmul.f32 %v26, %v38
    %v41 = vmul.f32 %v23, %v39
    %v42 = vmul.f32 %v24, %v40
    %43 = vst [vmem:[#allocation5] sm:$0xff] %v41
    %44 = vst [vmem:[#allocation5 + $0x8] sm:$0xff] %v42
    // Predicated region
    $region10: #{tpu_custom_call.1} parent=1 // pred_check
      _
    $region11: #{tpu_custom_call.1} parent=1 // pred_check_branch
      %46 = sbr.rel (0) target = $region13
    $region12: #{tpu_custom_call.1} parent=1 // pred_region
      %s48 = ssub.s32 256, 256
      %49 = vsyncadd [#allocation4], %s48
      %s50 = sshll.u32 [#allocation5], 4
      %s51 = int_to_ptr.vmem [resolvable:$true] %s50
      %56 = dma.vmem_to_hbm [thread:$0]  %s51, 256, %s1, [#allocation4], 128, 128, 8
    $region13: #{tpu_custom_call.1} parent=1 // pred_fallthru
      _
    // Predicated region
    $region14: #{tpu_custom_call.1} parent=1 // pred_check
      _
    $region15: #{tpu_custom_call.1} parent=1 // pred_check_branch
      %58 = sbr.rel (0) target = $region17
    $region16: #{tpu_custom_call.1} parent=1 // pred_region
      %59 = dma.done [#allocation4], 256
    $region17: #{tpu_custom_call.1} parent=1 // pred_fallthru
      _
    %60 = vsyncpa [#allocation3], 1
    %61 = vsyncpa [#allocation4], 1

</llo_original>
